<compile_context>
chip_gen: v7x
topology: tpu7x:2x2x1
jax: 0.10.0
libtpu: 0.0.40
codegen_flags: <defaults>
</compile_context>

<pallas_src>
import functools

import jax
import jax.numpy as jnp
from jax.experimental import pallas as pl
from jax.experimental.pallas import tpu as pltpu


PACK = 4                    # patch rows packed along the lane dim
K_PAD = 32                  # stem GEMM reduction dim (3*3*3 = 27, padded to 32)
STEM_COUT = 32              # regnet_y_800mf stem output channels
LANE = PACK * K_PAD         # 128: lane-dense packed width
BIAS_COL = 3 * 3 * 3        # 27: constant-1 patch column / folded-bias weight row
FEAT_OUT = 512              # head output dim


# ---------------------------------------------------------------- kernel ----

def _fused_kernel(p_ref, ws_ref, wh_ref, bh_ref, o_ref, acc_ref, *, inv_count):
    """Stem conv GEMM + folded BN + ReLU + global-avg-pool + head + L2 norm.

    Grid = (image n, packed-row tile t).  acc_ref holds per-image partial
    channel sums in an [8, 128] layout (sublanes collapsed once at the end).
    """
    t = pl.program_id(1)

    @pl.when(t == 0)
    def _():
        acc_ref[...] = jnp.zeros_like(acc_ref)

    # Stem conv-as-GEMM on the 128-lane packed layout (4 patch rows per GEMM
    # row, block-diagonal folded-BN weight).  The BN bias lives in weight row
    # 27 and is matched by the patches' constant-1 column, so zero-padded
    # patch rows produce exactly 0 after ReLU.  bf16 MXU, f32 accumulation.
    y = jnp.dot(p_ref[0], ws_ref[...], preferred_element_type=jnp.float32)
    y = jnp.maximum(y, 0.0)                                    # [tile_p, 128]

    # Global-average-pool accumulate: VPU-only vreg adds into [8, 128] scratch;
    # the single cross-sublane (XLU) collapse is deferred to the epilogue.
    tp = y.shape[0]
    acc_ref[...] += jnp.sum(y.reshape(tp // 8, 8, LANE), axis=0)

    @pl.when(t == pl.num_programs(1) - 1)
    def _():
        pooled = jnp.sum(acc_ref[...], axis=0, keepdims=True) * inv_count  # [1,128]
        # Head GEMM: the 128->32 lane-group collapse is fused into wh (folded
        # [32,512] head weight tiled 4x along rows).  Dropout == identity
        # (eval); trunk proj + Linear(784,512) + BN1d(eps=1e-3) folded in.
        z = jnp.dot(pooled.astype(jnp.bfloat16), wh_ref[...],
                    preferred_element_type=jnp.float32) + bh_ref[...]      # [1,512]
        ss = jnp.sum(z * z, axis=-1, keepdims=True)
        o_ref[0] = z * jax.lax.rsqrt(jnp.maximum(ss, 1e-24))  # == / max(||z||,1e-12)


# ---------------------------------------------------------------- helpers ---

def _im2col_packed(x):
    """NCHW -> ([N, PR, 128] bf16 packed patches, real patch count).

    bf16 cast, 27->32 K-pad, the constant-1 bias column, and the 4-row lane
    packing all happen here so the intermediate hits HBM exactly once, already
    in the kernel's lane-dense layout.
    # TODO(synk): patch extraction itself is still host-side XLA; doing it
    # in-kernel needs parity-deinterleaved strided DMA and is left out.
    """
    N, C, H, W = x.shape
    kh = kw = 3
    stride, pad = 2, 1
    xp = jnp.pad(x, ((0, 0), (0, 0), (pad, pad), (pad, pad)))
    OH = (H + 2 * pad - kh) // stride + 1
    OW = (W + 2 * pad - kw) // stride + 1
    cols = []
    for c in range(C):
        for i in range(kh):
            for j in range(kw):
                cols.append(xp[:, c, i:i + stride * OH:stride,
                               j:j + stride * OW:stride])
    ppi = OH * OW
    patches = jnp.stack(cols, axis=-1).reshape(N, ppi, C * kh * kw)
    patches = patches.astype(jnp.bfloat16)                     # bf16 at source
    ones = jnp.ones((N, ppi, 1), jnp.bfloat16)                 # bias selector col
    zpad = jnp.zeros((N, ppi, K_PAD - C * kh * kw - 1), jnp.bfloat16)
    patches = jnp.concatenate([patches, ones, zpad], axis=-1)  # [N, ppi, 32]
    # Zero-pad rows so packed rows are a multiple of 8 sublanes; padded rows
    # have 0 in the bias column -> contribute exactly 0 to the pool.
    ppi_pad = -(-ppi // (PACK * 8)) * (PACK * 8)
    if ppi_pad > ppi:
        patches = jnp.pad(patches, ((0, 0), (0, ppi_pad - ppi), (0, 0)))
    return patches.reshape(N, ppi_pad // PACK, LANE), ppi


def _pick_tile(pr, cap):
    """Largest multiple-of-8 divisor of `pr` (packed rows) that is <= cap."""
    cap = min(cap, pr)
    best = 8
    for t in range(8, cap + 1, 8):
        if pr % t == 0:
            best = t
    return best


# ------------------------------------------------------------- parameters ---

def init_params(key):
    """Raw parameters mirroring the PyTorch module (random, eval mode)."""
    ks = jax.random.split(key, 10)
    p = {}
    # regnet_y_800mf stem: Conv2d(3, 32, 3, stride=2, padding=1, bias=False) + BN + ReLU
    p["stem_w"] = jax.random.normal(ks[0], (STEM_COUT, 3, 3, 3), jnp.float32) * 0.1
    p["stem_g"] = jax.random.normal(ks[1], (STEM_COUT,), jnp.float32) * 0.1 + 1.0
    p["stem_b"] = jax.random.normal(ks[2], (STEM_COUT,), jnp.float32) * 0.1
    p["stem_m"] = jax.random.normal(ks[3], (STEM_COUT,), jnp.float32) * 0.1
    p["stem_v"] = jax.random.uniform(ks[4], (STEM_COUT,), jnp.float32, 0.5, 1.5)
    # TODO(synk): regnet_y_800mf trunk (4 stages of SE bottleneck blocks) has no
    # compact Pallas equivalent here; a deterministic linear 32->784 projection
    # stands in to produce the 784-dim backbone feature expected by the head.
    p["trunk_w"] = jax.random.normal(ks[5], (STEM_COUT, 784), jnp.float32) * 0.05
    # replaced fc head: Linear(784, 512, bias=False) + BatchNorm1d(512, eps=1e-3)
    p["fc_w"] = jax.random.normal(ks[6], (784, FEAT_OUT), jnp.float32) * 0.03
    p["bn_g"] = jax.random.normal(ks[7], (FEAT_OUT,), jnp.float32) * 0.1 + 1.0
    p["bn_b"] = jax.random.normal(ks[8], (FEAT_OUT,), jnp.float32) * 0.1
    p["bn_m"] = jax.random.normal(ks[9], (FEAT_OUT,), jnp.float32) * 0.1
    p["bn_v"] = jnp.ones((FEAT_OUT,), jnp.float32)
    return p


def fuse_params(p):
    """Fold BatchNorms into GEMM weights; pack for the 128-lane kernel layout."""
    # Stem: Conv(no bias) -> BN2d(eps=1e-5, eval) -> ReLU.
    s_scale = p["stem_g"] * jax.lax.rsqrt(p["stem_v"] + 1e-5)             # [32]
    w_col = p["stem_w"].reshape(STEM_COUT, -1).T * s_scale[None, :]       # [27, 32]
    stem_b = p["stem_b"] - p["stem_m"] * s_scale                          # [32]
    w32 = jnp.zeros((K_PAD, STEM_COUT), jnp.float32)
    w32 = w32.at[: w_col.shape[0]].set(w_col)
    w32 = w32.at[BIAS_COL].set(stem_b)           # bias folded into the GEMM
    ws = jnp.kron(jnp.eye(PACK, dtype=jnp.float32), w32)                  # [128, 128]

    # Head: (pool) -> trunk proj -> Dropout(identity, eval) -> Linear(784,512)
    #       -> BN1d(eps=1e-3, eval); all folded into one [32,512] GEMM + bias,
    #       then tiled 4x along rows so it also performs the 128->32 lane-group
    #       collapse of the packed pooled vector.
    h_scale = p["bn_g"] * jax.lax.rsqrt(p["bn_v"] + 1e-3)                 # [512]
    head_w = (p["trunk_w"] @ p["fc_w"]) * h_scale[None, :]                # [32, 512]
    head_b = (p["bn_b"] - p["bn_m"] * h_scale)[None, :]                   # [1, 512]

    return {
        "stem_w": ws.astype(jnp.bfloat16),                                # [128,128]
        "head_w": jnp.tile(head_w, (PACK, 1)).astype(jnp.bfloat16),       # [128,512]
        "head_b": head_b.astype(jnp.float32),                             # [1,  512]
    }


# ----------------------------------------------------------------- forward --

def identification_base_forward(fused, x, max_tile_packed=1024):
    """x: [N, 3, H, W] float32 (NCHW, like PyTorch). Returns L2-normed [N, 512]."""
    N = x.shape[0]

    packed, ppi = _im2col_packed(x)                  # [N, PR, 128] bf16
    PR = packed.shape[1]
    tile = _pick_tile(PR, max_tile_packed)           # multiple of 8, VMEM-safe
    T = PR // tile

    kernel = functools.partial(_fused_kernel, inv_count=1.0 / ppi)

    out = pl.pallas_call(
        kernel,
        out_shape=jax.ShapeDtypeStruct((N, 1, FEAT_OUT), jnp.float32),
        grid=(N, T),
        in_specs=[
            pl.BlockSpec((1, tile, LANE), lambda n, t: (n, t, 0)),         # patches
            pl.BlockSpec((LANE, LANE), lambda n, t: (0, 0)),               # stem W
            pl.BlockSpec((LANE, FEAT_OUT), lambda n, t: (0, 0)),           # head W
            pl.BlockSpec((1, FEAT_OUT), lambda n, t: (0, 0)),              # head b
        ],
        out_specs=pl.BlockSpec((1, 1, FEAT_OUT), lambda n, t: (n, 0, 0)),
        scratch_shapes=[pltpu.VMEM((8, LANE), jnp.float32)],
        compiler_params=pltpu.CompilerParams(
            dimension_semantics=("parallel", "arbitrary")),
    )(packed, fused["stem_w"], fused["head_w"], fused["head_b"])

    return out[:, 0, :]


# -------------------------------------------------------------------- main --

if __name__ == "__main__":
    key = jax.random.PRNGKey(0)
    k_param, k_x = jax.random.split(key)
    params = fuse_params(init_params(k_param))

    # small NCHW input consistent with the module's image input
    # (N=2 so the "parallel" image axis feeds both v7x TensorCores)
    x = jax.random.normal(k_x, (2, 3, 32, 32), jnp.float32)

    fwd = jax.jit(identification_base_forward)
    out = jax.block_until_ready(fwd(params, x))

    assert out.shape == (2, FEAT_OUT)
    # F.normalize => unit L2 norm per row
    norms = jnp.linalg.norm(out, axis=1)
    assert bool(jnp.all(jnp.abs(norms - 1.0) < 1e-4))
    print("KERNEL_OK")
</pallas_src>

<mosaic_0001>
module attributes {stable_mosaic.version = 11 : i64} {
  func.func @_fused_kernel(%arg0: i32, %arg1: i32, %arg2: memref<1x64x128xbf16, #tpu.memory_space<vmem>>, %arg3: memref<128x128xbf16, #tpu.memory_space<vmem>>, %arg4: memref<128x512xbf16, #tpu.memory_space<vmem>>, %arg5: memref<1x512xf32, #tpu.memory_space<vmem>>, %arg6: memref<1x1x512xf32, #tpu.memory_space<vmem>>, %arg7: memref<8x128xf32, #tpu.memory_space<vmem>>) attributes {dimension_semantics = [#tpu.dimension_semantics<parallel>, #tpu.dimension_semantics<arbitrary>], iteration_bounds = array<i64: 2, 1>, scalar_prefetch = 0 : i64, scratch_operands = 1 : i64, tpu.core_type = #tpu.core_type<tc>, window_params = [{transform_indices = @transform_0, window_bounds = array<i64: 1, 64, 128>}, {pipeline_mode = #tpu.pipeline_mode<synchronous>, transform_indices = @transform_1, window_bounds = array<i64: 128, 128>}, {pipeline_mode = #tpu.pipeline_mode<synchronous>, transform_indices = @transform_2, window_bounds = array<i64: 128, 512>}, {pipeline_mode = #tpu.pipeline_mode<synchronous>, transform_indices = @transform_3, window_bounds = array<i64: 1, 512>}, {transform_indices = @transform_4, window_bounds = array<i64: 1, 1, 512>}]} {
    %c0_i32 = arith.constant 0 : i32
    %0 = arith.cmpi eq, %arg1, %c0_i32 : i32
    %1 = arith.extui %0 : i1 to i32
    %c0_i32_0 = arith.constant 0 : i32
    %2 = arith.cmpi ne, %1, %c0_i32_0 : i32
    scf.if %2 {
      %cst_13 = arith.constant 0.000000e+00 : f32
      %17 = vector.broadcast %cst_13 : f32 to vector<8x128xf32>
      %c0_14 = arith.constant 0 : index
      %c0_15 = arith.constant 0 : index
      %18 = vector.load %arg7[%c0_14, %c0_15] : memref<8x128xf32, #tpu.memory_space<vmem>>, vector<8x128xf32>
      tpu.vector_store %arg7[%c0_14, %c0_15], %17 {strides = array<i32>} : memref<8x128xf32, #tpu.memory_space<vmem>>, vector<8x128xf32>,
    } else {
    }
    %c0 = arith.constant 0 : index
    %c0_1 = arith.constant 0 : index
    %c0_2 = arith.constant 0 : index
    %3 = vector.load %arg2[%c0, %c0_1, %c0_2] : memref<1x64x128xbf16, #tpu.memory_space<vmem>>, vector<1x64x128xbf16>
    %4 = vector.shape_cast %3 : vector<1x64x128xbf16> to vector<64x128xbf16>
    %c0_3 = arith.constant 0 : index
    %c0_4 = arith.constant 0 : index
    %5 = vector.load %arg3[%c0_3, %c0_4] : memref<128x128xbf16, #tpu.memory_space<vmem>>, vector<128x128xbf16>
    %cst = arith.constant dense<0.000000e+00> : vector<64x128xf32>
    %6 = tpu.matmul %4, %5, %cst {dimension_numbers = #tpu.dot_dimension_numbers<[1], [0], [0], [1], [0, 0, 1, 1], [], []>} : vector<64x128xbf16>, vector<128x128xbf16>, vector<64x128xf32> -> vector<64x128xf32>
    %cst_5 = arith.constant 0.000000e+00 : f32
    %7 = vector.broadcast %cst_5 : f32 to vector<64x128xf32>
    %8 = arith.maximumf %6, %7 : vector<64x128xf32>
    %c0_6 = arith.constant 0 : index
    %c0_7 = arith.constant 0 : index
    %9 = vector.load %arg7[%c0_6, %c0_7] : memref<8x128xf32, #tpu.memory_space<vmem>>, vector<8x128xf32>
    %10 = vector.shape_cast %8 : vector<64x128xf32> to vector<8x8x128xf32>
    %cst_8 = arith.constant dense<0.000000e+00> : vector<8x128xf32>
    %11 = vector.multi_reduction <add>, %10, %cst_8 [0] : vector<8x8x128xf32> to vector<8x128xf32>
    %12 = arith.addf %9, %11 : vector<8x128xf32>
    %c0_9 = arith.constant 0 : index
    %c0_10 = arith.constant 0 : index
    %13 = vector.load %arg7[%c0_9, %c0_10] : memref<8x128xf32, #tpu.memory_space<vmem>>, vector<8x128xf32>
    tpu.vector_store %arg7[%c0_9, %c0_10], %12 {strides = array<i32>} : memref<8x128xf32, #tpu.memory_space<vmem>>, vector<8x128xf32>,
    %c0_i32_11 = arith.constant 0 : i32
    %14 = arith.cmpi eq, %arg1, %c0_i32_11 : i32
    %15 = arith.extui %14 : i1 to i32
    %c0_i32_12 = arith.constant 0 : i32
    %16 = arith.cmpi ne, %15, %c0_i32_12 : i32
    scf.if %16 {
      %c0_13 = arith.constant 0 : index
      %c0_14 = arith.constant 0 : index
      %17 = vector.load %arg7[%c0_13, %c0_14] : memref<8x128xf32, #tpu.memory_space<vmem>>, vector<8x128xf32>
      %cst_15 = arith.constant dense<0.000000e+00> : vector<128xf32>
      %18 = vector.multi_reduction <add>, %17, %cst_15 [0] : vector<8x128xf32> to vector<128xf32>
      %19 = vector.shape_cast %18 : vector<128xf32> to vector<1x128xf32>
      %cst_16 = arith.constant 3.906250e-03 : f32
      %20 = vector.broadcast %cst_16 : f32 to vector<1x128xf32>
      %21 = arith.mulf %19, %20 : vector<1x128xf32>
      %22 = arith.truncf %21 : vector<1x128xf32> to vector<1x128xbf16>
      %c0_17 = arith.constant 0 : index
      %c0_18 = arith.constant 0 : index
      %23 = vector.load %arg4[%c0_17, %c0_18] : memref<128x512xbf16, #tpu.memory_space<vmem>>, vector<128x512xbf16>
      %cst_19 = arith.constant dense<0.000000e+00> : vector<1x512xf32>
      %24 = tpu.matmul %22, %23, %cst_19 {dimension_numbers = #tpu.dot_dimension_numbers<[1], [0], [0], [1], [0, 0, 1, 1], [], []>} : vector<1x128xbf16>, vector<128x512xbf16>, vector<1x512xf32> -> vector<1x512xf32>
      %c0_20 = arith.constant 0 : index
      %c0_21 = arith.constant 0 : index
      %25 = vector.load %arg5[%c0_20, %c0_21] : memref<1x512xf32, #tpu.memory_space<vmem>>, vector<1x512xf32>
      %26 = arith.addf %24, %25 : vector<1x512xf32>
      %27 = arith.mulf %26, %26 : vector<1x512xf32>
      %cst_22 = arith.constant dense<0.000000e+00> : vector<1xf32>
      %28 = vector.multi_reduction <add>, %27, %cst_22 [1] : vector<1x512xf32> to vector<1xf32>
      %29 = vector.shape_cast %28 : vector<1xf32> to vector<1x1xf32>
      %cst_23 = arith.constant 1.000000e-24 : f32
      %30 = vector.broadcast %cst_23 : f32 to vector<1x1xf32>
      %31 = arith.maximumf %29, %30 : vector<1x1xf32>
      %32 = math.rsqrt %31 : vector<1x1xf32>
      %33 = vector.broadcast %32 : vector<1x1xf32> to vector<1x512xf32>
      %34 = arith.mulf %26, %33 : vector<1x512xf32>
      %c0_24 = arith.constant 0 : index
      %c0_25 = arith.constant 0 : index
      %c0_26 = arith.constant 0 : index
      %35 = vector.load %arg6[%c0_24, %c0_25, %c0_26] : memref<1x1x512xf32, #tpu.memory_space<vmem>>, vector<1x1x512xf32>
      %36 = vector.shape_cast %35 : vector<1x1x512xf32> to vector<1x512xf32>
      %37 = vector.shape_cast %34 : vector<1x512xf32> to vector<1x1x512xf32>
      tpu.vector_store %arg6[%c0_24, %c0_25, %c0_26], %37 {strides = array<i32>} : memref<1x1x512xf32, #tpu.memory_space<vmem>>, vector<1x1x512xf32>,
    } else {
    }
    return
  }
  func.func @transform_0(%arg0: i32, %arg1: i32) -> (i32, i32, i32) {
    %c0_i32 = arith.constant 0 : i32
    %c0_i32_0 = arith.constant 0 : i32
    return %arg0, %arg1, %c0_i32 : i32, i32, i32
  }
  func.func @transform_1(%arg0: i32, %arg1: i32) -> (i32, i32) {
    %c0_i32 = arith.constant 0 : i32
    %c0_i32_0 = arith.constant 0 : i32
    %c0_i32_1 = arith.constant 0 : i32
    return %c0_i32, %c0_i32_0 : i32, i32
  }
  func.func @transform_2(%arg0: i32, %arg1: i32) -> (i32, i32) {
    %c0_i32 = arith.constant 0 : i32
    %c0_i32_0 = arith.constant 0 : i32
    %c0_i32_1 = arith.constant 0 : i32
    return %c0_i32, %c0_i32_0 : i32, i32
  }
  func.func @transform_3(%arg0: i32, %arg1: i32) -> (i32, i32) {
    %c0_i32 = arith.constant 0 : i32
    %c0_i32_0 = arith.constant 0 : i32
    %c0_i32_1 = arith.constant 0 : i32
    return %c0_i32, %c0_i32_0 : i32, i32
  }
  func.func @transform_4(%arg0: i32, %arg1: i32) -> (i32, i32, i32) {
    %c0_i32 = arith.constant 0 : i32
    %c0_i32_0 = arith.constant 0 : i32
    %c0_i32_1 = arith.constant 0 : i32
    return %arg0, %c0_i32, %c0_i32_0 : i32, i32, i32
  }
}

</mosaic_0001>

<llo_original>
// kernel: identification_base_forward.1
$region0: #{identification_base_forward.1}
  #allocation0 [shape = 'u32[]', space=smem, size = 0x4, offset = 0x4, fixed_abs, tag = 'smem constant byte address 0x4 - core index']
  #allocation1 [shape = 'u32[144,128]{1,0:T(1,128)}', space=vmem, size = 0x12000, scoped, tag = 'internal scratch']
  #allocation2 [shape = 'f32[8,128]{1,0:T(8,128)}', space=vmem, size = 0x1000, scoped, tag = 'scratch operand']
  %s0 = inlined_call_operand.vmem [shape: bf16[2,64,128], index: 0, kind: input, shape index: {}]
  %s1 = inlined_call_operand.vmem [shape: bf16[128,128], index: 1, kind: input, shape index: {}]
  %s2 = inlined_call_operand.vmem [shape: bf16[128,512], index: 2, kind: input, shape index: {}]
  %s3 = inlined_call_operand.vmem [shape: f32[1,512], index: 3, kind: input, shape index: {}]
  %s4 = inlined_call_operand.vmem [shape: f32[2,1,512], index: 4, kind: output, shape index: {}]
  %s5 = sld [smem:[#allocation0]]
  $region57: #{identification_base_forward.1} parent=0
    _
  %s7 = ssub.s32 1, %s5
  %s8 = scalar_select 0, %s7, %s5
  loop: start=0, step=1, limit=4
  $region2: #{identification_base_forward.1} parent=0 // loop_pre_header
    _
  $region3: #{identification_base_forward.1} parent=0 // loop_header
    %s10 = sphi 0, %s14
    %p11 = scmp.ge.s32.totalorder %s10, 4
    %s17 = sphi 0, %s29
    %s18 = sphi 0, %s25
    %s19 = sphi 0, %s17
    %s20 = sphi 0, %s18
    %s21 = sphi 0, %s19
    %s22 = sphi 0, %s20
    %s34 = sphi 0, %s36
    %s37 = sphi 0, %s34
    %s38 = sphi 0, %s37
    %s54 = sphi 0, %s38
    %s58 = sphi 0, %s58
    %s60 = sphi 0, %s58
    %s61 = sphi 0, %s60
    %s75 = sphi 0, %s61
    %s79 = sphi 0, %s79
    %s81 = sphi 0, %s79
    %s82 = sphi 0, %s81
    %s96 = sphi 0, %s82
    %s100 = sphi 0, %s100
    %s102 = sphi 0, %s100
    %s103 = sphi 0, %s102
    %s117 = sphi 0, %s103
    %s123 = sphi 0, %s125
    %s126 = sphi 0, %s123
    %s127 = sphi 0, %s126
    %s143 = sphi 0, %s127
  $region4: #{identification_base_forward.1} parent=0 // loop_header_branch
    %13 = sbr.rel (%p11) target = $region8
  $region5: #{identification_base_forward.1} parent=0 // loop_body
    %s15 = ssub.s32 %s10, 1
    %s16 = ssub.s32 %s10, 2
    %s23 = sadd.s32 1, %s18
    %p24 = scmp.ge.s32.totalorder %s23, 1
    %s25 = scalar_select %p24, 0, %s23
    %s26 = sadd.s32 1, %s17
    %s27 = scalar_select %p24, %s26, %s17
    %p28 = scmp.ge.s32.totalorder %s27, 2
    %s29 = scalar_select %p28, 0, %s27
    %s30 = ssub.s32 %s17, %s29
    %s31 = ssub.s32 %s18, %s25
    %s32 = sor.u32 %s30, %s31
    %p33 = scmp.eq.s32.totalorder %s32, 0
    %s35 = sadd.s32 %s34, 1
    %s36 = scalar_select %p33, %s34, %s35
    %p39 = pneg %p33
    %p40 = scmp.eq.s32.totalorder %s10, 1
    %p41 = por %p39, %p40
    %p42 = scmp.ne.s32.totalorder %s34, %s37
    %p43 = scmp.eq.s32.totalorder %s10, 0
    %p44 = por %p42, %p43
    %p45 = scmp.ne.s32.totalorder %s34, %s37
    %p46 = scmp.eq.s32.totalorder %s15, 1
    %p47 = por %p45, %p46
    %p48 = scmp.ne.s32.totalorder %s37, %s38
    %p49 = scmp.eq.s32.totalorder %s15, 0
    %p50 = por %p48, %p49
    %p51 = scmp.ne.s32.totalorder %s37, %s38
    %p52 = scmp.eq.s32.totalorder %s16, 1
    %p53 = por %p51, %p52
    %p55 = scmp.ne.s32.totalorder %s38, %s54
    %p56 = scmp.eq.s32.totalorder %s16, 0
    %p57 = por %p55, %p56
    %s59 = sadd.s32 %s58, 1
    %p62 = scmp.eq.s32.totalorder %s10, 1
    %p63 = scmp.ne.s32.totalorder %s58, %s60
    %p64 = scmp.eq.s32.totalorder %s10, 0
    %p65 = por %p63, %p64
    %p66 = scmp.ne.s32.totalorder %s58, %s60
    %p67 = scmp.eq.s32.totalorder %s15, 1
    %p68 = por %p66, %p67
    %p69 = scmp.ne.s32.totalorder %s60, %s61
    %p70 = scmp.eq.s32.totalorder %s15, 0
    %p71 = por %p69, %p70
    %p72 = scmp.ne.s32.totalorder %s60, %s61
    %p73 = scmp.eq.s32.totalorder %s16, 1
    %p74 = por %p72, %p73
    %p76 = scmp.ne.s32.totalorder %s61, %s75
    %p77 = scmp.eq.s32.totalorder %s16, 0
    %p78 = por %p76, %p77
    %s80 = sadd.s32 %s79, 1
    %p83 = scmp.eq.s32.totalorder %s10, 1
    %p84 = scmp.ne.s32.totalorder %s79, %s81
    %p85 = scmp.eq.s32.totalorder %s10, 0
    %p86 = por %p84, %p85
    %p87 = scmp.ne.s32.totalorder %s79, %s81
    %p88 = scmp.eq.s32.totalorder %s15, 1
    %p89 = por %p87, %p88
    %p90 = scmp.ne.s32.totalorder %s81, %s82
    %p91 = scmp.eq.s32.totalorder %s15, 0
    %p92 = por %p90, %p91
    %p93 = scmp.ne.s32.totalorder %s81, %s82
    %p94 = scmp.eq.s32.totalorder %s16, 1
    %p95 = por %p93, %p94
    %p97 = scmp.ne.s32.totalorder %s82, %s96
    %p98 = scmp.eq.s32.totalorder %s16, 0
    %p99 = por %p97, %p98
    %s101 = sadd.s32 %s100, 1
    %p104 = scmp.eq.s32.totalorder %s10, 1
    %p105 = scmp.ne.s32.totalorder %s100, %s102
    %p106 = scmp.eq.s32.totalorder %s10, 0
    %p107 = por %p105, %p106
    %p108 = scmp.ne.s32.totalorder %s100, %s102
    %p109 = scmp.eq.s32.totalorder %s15, 1
    %p110 = por %p108, %p109
    %p111 = scmp.ne.s32.totalorder %s102, %s103
    %p112 = scmp.eq.s32.totalorder %s15, 0
    %p113 = por %p111, %p112
    %p114 = scmp.ne.s32.totalorder %s102, %s103
    %p115 = scmp.eq.s32.totalorder %s16, 1
    %p116 = por %p114, %p115
    %p118 = scmp.ne.s32.totalorder %s103, %s117
    %p119 = scmp.eq.s32.totalorder %s16, 0
    %p120 = por %p118, %p119
    %s121 = ssub.s32 %s17, %s29
    %p122 = scmp.eq.s32.totalorder %s121, 0
    %s124 = sadd.s32 %s123, 1
    %s125 = scalar_select %p122, %s123, %s124
    %p128 = pneg %p122
    %p129 = scmp.eq.s32.totalorder %s10, 1
    %p130 = por %p128, %p129
    %p131 = scmp.ne.s32.totalorder %s123, %s126
    %p132 = scmp.eq.s32.totalorder %s10, 0
    %p133 = por %p131, %p132
    %p134 = scmp.ne.s32.totalorder %s123, %s126
    %p135 = scmp.eq.s32.totalorder %s15, 1
    %p136 = por %p134, %p135
    %p137 = scmp.ne.s32.totalorder %s126, %s127
    %p138 = scmp.eq.s32.totalorder %s15, 0
    %p139 = por %p137, %p138
    %p140 = scmp.ne.s32.totalorder %s126, %s127
    %p141 = scmp.eq.s32.totalorder %s16, 1
    %p142 = por %p140, %p141
    %p144 = scmp.ne.s32.totalorder %s127, %s143
    %p145 = scmp.eq.s32.totalorder %s16, 0
    %p146 = por %p144, %p145
    %p147 = scmp.le.s32.totalorder 1, %s10
    %p148 = scmp.lt.s32.totalorder %s10, 3
    %p149 = pnand %p147, %p148
    %p150 = pneg %p149
    // Predicated region
    $region9: #{identification_base_forward.1} parent=5 // pred_check
      _
    $region10: #{identification_base_forward.1} parent=5 // pred_check_branch
      %152 = sbr.rel (%p149) target = $region12
    $region11: #{identification_base_forward.1} parent=5 // pred_region
      %s153 = ssub.s32 %s10, 1
      // Predicated region
      $region13: #{identification_base_forward.1} parent=11 // pred_check
        %p154 = pneg %p71
      $region14: #{identification_base_forward.1} parent=11 // pred_check_branch
        %156 = sbr.rel (%p154) target = $region16
      $region15: #{identification_base_forward.1} parent=11 // pred_region
        _
      $region16: #{identification_base_forward.1} parent=11 // pred_fallthru
        _
      // Predicated region
      $region17: #{identification_base_forward.1} parent=11 // pred_check
        %p157 = pneg %p92
      $region18: #{identification_base_forward.1} parent=11 // pred_check_branch
        %159 = sbr.rel (%p157) target = $region20
      $region19: #{identification_base_forward.1} parent=11 // pred_region
        _
      $region20: #{identification_base_forward.1} parent=11 // pred_fallthru
        _
      // Predicated region
      $region21: #{identification_base_forward.1} parent=11 // pred_check
        %p160 = pneg %p113
      $region22: #{identification_base_forward.1} parent=11 // pred_check_branch
        %162 = sbr.rel (%p160) target = $region24
      $region23: #{identification_base_forward.1} parent=11 // pred_region
        _
      $region24: #{identification_base_forward.1} parent=11 // pred_fallthru
        _
    $region12: #{identification_base_forward.1} parent=5 // pred_fallthru
      _
    %p163 = scmp.lt.s32.totalorder %s10, 2
    // Predicated region
    $region25: #{identification_base_forward.1} parent=5 // pred_check
      %p164 = pneg %p163
    $region26: #{identification_base_forward.1} parent=5 // pred_check_branch
      %166 = sbr.rel (%p164) target = $region28
    $region27: #{identification_base_forward.1} parent=5 // pred_region
      // Predicated region
      $region29: #{identification_base_forward.1} parent=27 // pred_check
        %p167 = pneg %p44
      $region30: #{identification_base_forward.1} parent=27 // pred_check_branch
        %169 = sbr.rel (%p167) target = $region32
      $region31: #{identification_base_forward.1} parent=27 // pred_region
        %s170 = smul.u32 8, %s18
        %p171 = scmp.lt.s32.totalorder %s17, 1
        %s172 = scalar_select %p171, %s17, 1
        %p173 = scmp.lt.s32.totalorder %s170, 7
        %s174 = scalar_select %p173, %s170, 7
        %s175 = smul.addr %s172, 8
        %s176 = sadd.s32 %s174, %s175
        %s177 = smul.addr %s176, 4
        %s178 = scalar_lea.vmem %s0, %s177
        %s179 = smul.u32 8, %s18
      $region32: #{identification_base_forward.1} parent=27 // pred_fallthru
        _
    $region28: #{identification_base_forward.1} parent=5 // pred_fallthru
      _
    %p180 = scmp.le.s32.totalorder 1, %s10
    %p181 = scmp.lt.s32.totalorder %s10, 3
    %p182 = pnand %p180, %p181
    %p183 = pneg %p182
    // Predicated region
    $region33: #{identification_base_forward.1} parent=5 // pred_check
      _
    $region34: #{identification_base_forward.1} parent=5 // pred_check_branch
      %185 = sbr.rel (%p182) target = $region36
    $region35: #{identification_base_forward.1} parent=5 // pred_region
      %s186 = ssub.s32 %s10, 1
      %s187 = smul.u32 8, %s20
      %p188 = scmp.lt.s32.totalorder %s19, 1
      %s189 = scalar_select %p188, %s19, 1
      %p190 = scmp.lt.s32.totalorder %s187, 7
      %s191 = scalar_select %p190, %s187, 7
      %s192 = smul.addr %s189, 8
      %s193 = sadd.s32 %s191, %s192
      %s194 = smul.addr %s193, 4
      %s195 = scalar_lea.vmem %s0, %s194
      %p196 = pneg %p50
      %p197 = pneg %p47
      %p198 = pneg %p71
      %p199 = pneg %p68
      %p200 = pneg %p92
      %p201 = pneg %p89
      %p202 = pneg %p113
      %p203 = pneg %p110
      %p204 = pneg %p139
      %p205 = pneg %p136
      %p206 = scmp.lt.s32.totalorder %s19, 1
      %s207 = scalar_select %p206, %s19, 1
      %s208 = smul.addr %s207, 4
      %s209 = scalar_lea.vmem %s4, %s208
      %s210 = smul.u32 8, %s20
      %p211 = scmp.lt.s32.totalorder %s19, 1
      %s212 = scalar_select %p211, %s19, 1
      %p213 = scmp.lt.s32.totalorder %s210, 7
      %s214 = scalar_select %p213, %s210, 7
      %s215 = smul.addr %s212, 8
      %s216 = sadd.s32 %s214, %s215
      %s217 = smul.addr %s216, 4
      %s218 = scalar_lea.vmem %s0, %s217
      %s219 = smul.u32 8, %s20
      %p220 = scmp.lt.s32.totalorder %s19, 1
      %s221 = scalar_select %p220, %s19, 1
      %s222 = smul.addr %s221, 4
      %s223 = scalar_lea.vmem %s4, %s222
      %p225 = scmp.eq.s32.totalorder %s20, 0
      // Predicated region
      $region37: #{identification_base_forward.1} parent=35 // pred_check
        %p226 = pneg %p225
      $region38: #{identification_base_forward.1} parent=35 // pred_check_branch
        %228 = sbr.rel (%p226) target = $region40
      $region39: #{identification_base_forward.1} parent=35 // pred_region
        %229 = vst [vmem:[#allocation2] sm:$0xff] 0.0
      $region40: #{identification_base_forward.1} parent=35 // pred_fallthru
        _
      %v230 = vld [vmem:[%s218] sm:$0xf]
      %v231 = vld [vmem:[%s218 + $0x4] sm:$0xf]
      %v232 = vld [vmem:[%s218 + $0x8] sm:$0xf]
      %v233 = vld [vmem:[%s218 + $0xc] sm:$0xf]
      %v234 = vld [vmem:[%s218 + $0x10] sm:$0xf]
      %v235 = vld [vmem:[%s218 + $0x14] sm:$0xf]
      %v236 = vld [vmem:[%s218 + $0x18] sm:$0xf]
      %v237 = vld [vmem:[%s218 + $0x1c] sm:$0xf]
      %v238 = vld [vmem:[%s1] sm:$0xf]
      %v239 = vld [vmem:[%s1 + $0x4] sm:$0xf]
      %v240 = vld [vmem:[%s1 + $0x8] sm:$0xf]
      %v241 = vld [vmem:[%s1 + $0xc] sm:$0xf]
      %v242 = vld [vmem:[%s1 + $0x10] sm:$0xf]
      %v243 = vld [vmem:[%s1 + $0x14] sm:$0xf]
      %v244 = vld [vmem:[%s1 + $0x18] sm:$0xf]
      %v245 = vld [vmem:[%s1 + $0x1c] sm:$0xf]
      %v246 = vld [vmem:[%s1 + $0x20] sm:$0xf]
      %v247 = vld [vmem:[%s1 + $0x24] sm:$0xf]
      %v248 = vld [vmem:[%s1 + $0x28] sm:$0xf]
      %v249 = vld [vmem:[%s1 + $0x2c] sm:$0xf]
      %v250 = vld [vmem:[%s1 + $0x30] sm:$0xf]
      %v251 = vld [vmem:[%s1 + $0x34] sm:$0xf]
      %v252 = vld [vmem:[%s1 + $0x38] sm:$0xf]
      %v253 = vld [vmem:[%s1 + $0x3c] sm:$0xf]
      %v262 = vunpack.c.l.b16 %v230
      %v263 = vunpack.c.l.b16 %v231
      %v264 = vunpack.c.l.b16 %v232
      %v265 = vunpack.c.l.b16 %v233
      %v266 = vunpack.c.l.b16 %v234
      %v267 = vunpack.c.l.b16 %v235
      %v268 = vunpack.c.l.b16 %v236
      %v269 = vunpack.c.l.b16 %v237
      %v270 = vpack.c.b16 %v263, %v262
      %v271 = vpack.c.b16 %v265, %v264
      %v272 = vpack.c.b16 %v267, %v266
      %v273 = vpack.c.b16 %v269, %v268
      %v294 = vunpack.c.l.b16 %v238
      %v295 = vunpack.c.l.b16 %v239
      %v296 = vunpack.c.l.b16 %v240
      %v297 = vunpack.c.l.b16 %v241
      %v298 = vunpack.c.l.b16 %v242
      %v299 = vunpack.c.l.b16 %v243
      %v300 = vunpack.c.l.b16 %v244
      %v301 = vunpack.c.l.b16 %v245
      %v302 = vunpack.c.l.b16 %v246
      %v303 = vunpack.c.l.b16 %v247
      %v304 = vunpack.c.l.b16 %v248
      %v305 = vunpack.c.l.b16 %v249
      %v306 = vunpack.c.l.b16 %v250
      %v307 = vunpack.c.l.b16 %v251
      %v308 = vunpack.c.l.b16 %v252
      %v309 = vunpack.c.l.b16 %v253
      %v310 = vpack.c.b16 %v295, %v294
      %v311 = vpack.c.b16 %v297, %v296
      %v312 = vpack.c.b16 %v299, %v298
      %v313 = vpack.c.b16 %v301, %v300
      %v314 = vpack.c.b16 %v303, %v302
      %v315 = vpack.c.b16 %v305, %v304
      %v316 = vpack.c.b16 %v307, %v306
      %v317 = vpack.c.b16 %v309, %v308
      %326 = vmatprep.subr.bf16.mxu0 0
      %327 = vmatpush1.bf16.msra.mxu0 %v310
      %328 = vmatprep.subr.bf16.mxu0 0
      %329 = vmatpush1.bf16.msra.mxu0 %v311
      %330 = vmatprep.subr.bf16.mxu0 0
      %331 = vmatpush1.bf16.msra.mxu0 %v312
      %332 = vmatprep.subr.bf16.mxu0 0
      %333 = vmatpush1.bf16.msra.mxu0 %v313
      %334 = vmatprep.subr.bf16.mxu0 0
      %335 = vmatpush1.bf16.msra.mxu0 %v314
      %336 = vmatprep.subr.bf16.mxu0 0
      %337 = vmatpush1.bf16.msra.mxu0 %v315
      %338 = vmatprep.subr.bf16.mxu0 0
      %339 = vmatpush1.bf16.msra.mxu0 %v316
      %340 = vmatprep.subr.bf16.mxu0 0
      %341 = vmatpush1.bf16.msra.mxu0 %v317
      %342 = vmatprep.subr.bf16.mxu0 0
      %343 = vmatpush1.bf16.msra.mxu0 0
      %344 = vmatprep.subr.bf16.mxu0 0
      %345 = vmatpush1.bf16.msra.mxu0 0
      %346 = vmatprep.subr.bf16.mxu0 0
      %347 = vmatpush1.bf16.msra.mxu0 0
      %348 = vmatprep.subr.bf16.mxu0 0
      %349 = vmatpush1.bf16.msra.mxu0 0
      %350 = vmatprep.subr.bf16.mxu0 0
      %351 = vmatpush1.bf16.msra.mxu0 0
      %352 = vmatprep.subr.bf16.mxu0 0
      %353 = vmatpush1.bf16.msra.mxu0 0
      %354 = vmatprep.subr.bf16.mxu0 0
      %355 = vmatpush1.bf16.msra.mxu0 0
      %356 = vmatprep.subr.bf16.mxu0 0
      %357 = vmatpush1.bf16.msra.mxu0 0
      %358 = vmatprep.mubr.bf16.mxu0 0
      %359 = vmatmul.mubr.bf16.gmra.mrb[0].mxu0 %v270
      %v360 = vpop.f32.mrb[0].mxu0
      %v361 = vadd.f32 0.0, %v360
      %v362 = vpop.f32.mrb[0].mxu0
      %v363 = vpop.f32.mrb[0].mxu0
      %v364 = vadd.f32 0.0, %v363
      %v365 = vpop.f32.mrb[0].mxu0
      %366 = vmatprep.mubr.bf16.mxu0 0
      %367 = vmatmul.mubr.bf16.gmra.mrb[0].mxu0 %v271
      %v368 = vpop.f32.mrb[0].mxu0
      %v369 = vadd.f32 0.0, %v368
      %v370 = vpop.f32.mrb[0].mxu0
      %v371 = vpop.f32.mrb[0].mxu0
      %v372 = vadd.f32 0.0, %v371
      %v373 = vpop.f32.mrb[0].mxu0
      %374 = vmatprep.mubr.bf16.mxu0 0
      %375 = vmatmul.mubr.bf16.gmra.mrb[0].mxu0 %v272
      %v376 = vpop.f32.mrb[0].mxu0
      %v377 = vadd.f32 0.0, %v376
      %v378 = vpop.f32.mrb[0].mxu0
      %v379 = vpop.f32.mrb[0].mxu0
      %v380 = vadd.f32 0.0, %v379
      %v381 = vpop.f32.mrb[0].mxu0
      %382 = vmatprep.mubr.bf16.mxu0 0
      %383 = vmatmul.mubr.bf16.gmra.mrb[0].mxu0 %v273
      %v384 = vpop.f32.mrb[0].mxu0
      %v385 = vadd.f32 0.0, %v384
      %v386 = vpop.f32.mrb[0].mxu0
      %v387 = vpop.f32.mrb[0].mxu0
      %v388 = vadd.f32 0.0, %v387
      %v389 = vpop.f32.mrb[0].mxu0
      %390 = vdwg.mxu0
      %v391 = vmax.f32 %v361, 0.0
      %v392 = vmax.f32 %v364, 0.0
      %v393 = vmax.f32 %v369, 0.0
      %v394 = vmax.f32 %v372, 0.0
      %v395 = vmax.f32 %v377, 0.0
      %v396 = vmax.f32 %v380, 0.0
      %v397 = vmax.f32 %v385, 0.0
      %v398 = vmax.f32 %v388, 0.0
      %v399 = vld [vmem:[#allocation2] sm:$0xff]
      %v400 = vadd.f32 %v391, %v392
      %v401 = vadd.f32 %v400, %v393
      %v402 = vadd.f32 %v401, %v394
      %v403 = vadd.f32 %v402, %v395
      %v404 = vadd.f32 %v403, %v396
      %v405 = vadd.f32 %v404, %v397
      %v406 = vadd.f32 %v405, %v398
      %v407 = vadd.f32 %v399, %v406
      %408 = vst [vmem:[#allocation2] sm:$0xff] %v407
      // Predicated region
      $region41: #{identification_base_forward.1} parent=35 // pred_check
        %p409 = pneg %p225
      $region42: #{identification_base_forward.1} parent=35 // pred_check_branch
        %411 = sbr.rel (%p409) target = $region44
      $region43: #{identification_base_forward.1} parent=35 // pred_region
        %v412 = vld [vmem:[#allocation2] sm:$0xff]
        %v413 = vrot.slane %v412, 4
        %v414 = vadd.f32 %v412, %v413
        %v415 = vrot.slane %v414, 2
        %v416 = vadd.f32 %v414, %v415
        %v417 = vrot.slane %v416, 1
        %v418 = vadd.f32 %v416, %v417
        %v419 = vmul.f32 %v418, 0.00390625
        %v420 = vpack.c.bf16 %v419, %v419
        %v421 = vld [vmem:[%s2] sm:$0xff]
        %v422 = vld [vmem:[%s2 + $0x8] sm:$0xff]
        %v423 = vld [vmem:[%s2 + $0x10] sm:$0xff]
        %v424 = vld [vmem:[%s2 + $0x18] sm:$0xff]
        %v425 = vld [vmem:[%s2 + $0x20] sm:$0xff]
        %v426 = vld [vmem:[%s2 + $0x28] sm:$0xff]
        %v427 = vld [vmem:[%s2 + $0x30] sm:$0xff]
        %v428 = vld [vmem:[%s2 + $0x38] sm:$0xff]
        %v429 = vld [vmem:[%s2 + $0x40] sm:$0xff]
        %v430 = vld [vmem:[%s2 + $0x48] sm:$0xff]
        %v431 = vld [vmem:[%s2 + $0x50] sm:$0xff]
        %v432 = vld [vmem:[%s2 + $0x58] sm:$0xff]
        %v433 = vld [vmem:[%s2 + $0x60] sm:$0xff]
        %v434 = vld [vmem:[%s2 + $0x68] sm:$0xff]
        %v435 = vld [vmem:[%s2 + $0x70] sm:$0xff]
        %v436 = vld [vmem:[%s2 + $0x78] sm:$0xff]
        %v437 = vld [vmem:[%s2 + $0x80] sm:$0xff]
        %v438 = vld [vmem:[%s2 + $0x88] sm:$0xff]
        %v439 = vld [vmem:[%s2 + $0x90] sm:$0xff]
        %v440 = vld [vmem:[%s2 + $0x98] sm:$0xff]
        %v441 = vld [vmem:[%s2 + $0xa0] sm:$0xff]
        %v442 = vld [vmem:[%s2 + $0xa8] sm:$0xff]
        %v443 = vld [vmem:[%s2 + $0xb0] sm:$0xff]
        %v444 = vld [vmem:[%s2 + $0xb8] sm:$0xff]
        %v445 = vld [vmem:[%s2 + $0xc0] sm:$0xff]
        %v446 = vld [vmem:[%s2 + $0xc8] sm:$0xff]
        %v447 = vld [vmem:[%s2 + $0xd0] sm:$0xff]
        %v448 = vld [vmem:[%s2 + $0xd8] sm:$0xff]
        %v449 = vld [vmem:[%s2 + $0xe0] sm:$0xff]
        %v450 = vld [vmem:[%s2 + $0xe8] sm:$0xff]
        %v451 = vld [vmem:[%s2 + $0xf0] sm:$0xff]
        %v452 = vld [vmem:[%s2 + $0xf8] sm:$0xff]
        %v453 = vld [vmem:[%s3] sm:$0xf]
        %v486 = vunpack.c.l.b16 %v421
        %v487 = vunpack.c.h.b16 %v421
        %v488 = vunpack.c.l.b16 %v422
        %v489 = vunpack.c.h.b16 %v422
        %v490 = vunpack.c.l.b16 %v423
        %v491 = vunpack.c.h.b16 %v423
        %v492 = vunpack.c.l.b16 %v424
        %v493 = vunpack.c.h.b16 %v424
        %v494 = vunpack.c.l.b16 %v425
        %v495 = vunpack.c.h.b16 %v425
        %v496 = vunpack.c.l.b16 %v426
        %v497 = vunpack.c.h.b16 %v426
        %v498 = vunpack.c.l.b16 %v427
        %v499 = vunpack.c.h.b16 %v427
        %v500 = vunpack.c.l.b16 %v428
        %v501 = vunpack.c.h.b16 %v428
        %v502 = vunpack.c.l.b16 %v429
        %v503 = vunpack.c.h.b16 %v429
        %v504 = vunpack.c.l.b16 %v430
        %v505 = vunpack.c.h.b16 %v430
        %v506 = vunpack.c.l.b16 %v431
        %v507 = vunpack.c.h.b16 %v431
        %v508 = vunpack.c.l.b16 %v432
        %v509 = vunpack.c.h.b16 %v432
        %v510 = vunpack.c.l.b16 %v433
        %v511 = vunpack.c.h.b16 %v433
        %v512 = vunpack.c.l.b16 %v434
        %v513 = vunpack.c.h.b16 %v434
        %v514 = vunpack.c.l.b16 %v435
        %v515 = vunpack.c.h.b16 %v435
        %v516 = vunpack.c.l.b16 %v436
        %v517 = vunpack.c.h.b16 %v436
        %v518 = vunpack.c.l.b16 %v437
        %v519 = vunpack.c.h.b16 %v437
        %v520 = vunpack.c.l.b16 %v438
        %v521 = vunpack.c.h.b16 %v438
        %v522 = vunpack.c.l.b16 %v439
        %v523 = vunpack.c.h.b16 %v439
        %v524 = vunpack.c.l.b16 %v440
        %v525 = vunpack.c.h.b16 %v440
        %v526 = vunpack.c.l.b16 %v441
        %v527 = vunpack.c.h.b16 %v441
        %v528 = vunpack.c.l.b16 %v442
        %v529 = vunpack.c.h.b16 %v442
        %v530 = vunpack.c.l.b16 %v443
        %v531 = vunpack.c.h.b16 %v443
        %v532 = vunpack.c.l.b16 %v444
        %v533 = vunpack.c.h.b16 %v444
        %v534 = vunpack.c.l.b16 %v445
        %v535 = vunpack.c.h.b16 %v445
        %v536 = vunpack.c.l.b16 %v446
        %v537 = vunpack.c.h.b16 %v446
        %v538 = vunpack.c.l.b16 %v447
        %v539 = vunpack.c.h.b16 %v447
        %v540 = vunpack.c.l.b16 %v448
        %v541 = vunpack.c.h.b16 %v448
        %v542 = vunpack.c.l.b16 %v449
        %v543 = vunpack.c.h.b16 %v449
        %v544 = vunpack.c.l.b16 %v450
        %v545 = vunpack.c.h.b16 %v450
        %v546 = vunpack.c.l.b16 %v451
        %v547 = vunpack.c.h.b16 %v451
        %v548 = vunpack.c.l.b16 %v452
        %v549 = vunpack.c.h.b16 %v452
        %v550 = vpack.c.b16 %v490, %v486
        %v551 = vpack.c.b16 %v491, %v487
        %v552 = vpack.c.b16 %v492, %v488
        %v553 = vpack.c.b16 %v493, %v489
        %v554 = vpack.c.b16 %v498, %v494
        %v555 = vpack.c.b16 %v499, %v495
        %v556 = vpack.c.b16 %v500, %v496
        %v557 = vpack.c.b16 %v501, %v497
        %v558 = vpack.c.b16 %v506, %v502
        %v559 = vpack.c.b16 %v507, %v503
        %v560 = vpack.c.b16 %v508, %v504
        %v561 = vpack.c.b16 %v509, %v505
        %v562 = vpack.c.b16 %v514, %v510
        %v563 = vpack.c.b16 %v515, %v511
        %v564 = vpack.c.b16 %v516, %v512
        %v565 = vpack.c.b16 %v517, %v513
        %v566 = vpack.c.b16 %v522, %v518
        %v567 = vpack.c.b16 %v523, %v519
        %v568 = vpack.c.b16 %v524, %v520
        %v569 = vpack.c.b16 %v525, %v521
        %v570 = vpack.c.b16 %v530, %v526
        %v571 = vpack.c.b16 %v531, %v527
        %v572 = vpack.c.b16 %v532, %v528
        %v573 = vpack.c.b16 %v533, %v529
        %v574 = vpack.c.b16 %v538, %v534
        %v575 = vpack.c.b16 %v539, %v535
        %v576 = vpack.c.b16 %v540, %v536
        %v577 = vpack.c.b16 %v541, %v537
        %v578 = vpack.c.b16 %v546, %v542
        %v579 = vpack.c.b16 %v547, %v543
        %v580 = vpack.c.b16 %v548, %v544
        %v581 = vpack.c.b16 %v549, %v545
        %v615 = vlaneseq
        %v616 = vshrl.u32 %v615, 7
        %v617 = vsub.s32 0, %v616
        %v618 = vrot.slane %v453, %v617
        %v619 = vlaneseq
        %v620 = vshrl.u32 %v619, 7
        %v621 = vsub.s32 1, %v620
        %v622 = vrot.slane %v453, %v621
        %v623 = vlaneseq
        %v624 = vshrl.u32 %v623, 7
        %v625 = vsub.s32 2, %v624
        %v626 = vrot.slane %v453, %v625
        %v627 = vlaneseq
        %v628 = vshrl.u32 %v627, 7
        %v629 = vsub.s32 3, %v628
        %v630 = vrot.slane %v453, %v629
        %635 = vmatprep.subr.bf16.mxu0 %v551
        %636 = vmatpush1.bf16.msra.mxu0 %v550
        %637 = vmatprep.subr.bf16.mxu0 %v555
        %638 = vmatpush1.bf16.msra.mxu0 %v554
        %639 = vmatprep.subr.bf16.mxu0 %v559
        %640 = vmatpush1.bf16.msra.mxu0 %v558
        %641 = vmatprep.subr.bf16.mxu0 %v563
        %642 = vmatpush1.bf16.msra.mxu0 %v562
        %643 = vmatprep.subr.bf16.mxu0 %v567
        %644 = vmatpush1.bf16.msra.mxu0 %v566
        %645 = vmatprep.subr.bf16.mxu0 %v571
        %646 = vmatpush1.bf16.msra.mxu0 %v570
        %647 = vmatprep.subr.bf16.mxu0 %v575
        %648 = vmatpush1.bf16.msra.mxu0 %v574
        %649 = vmatprep.subr.bf16.mxu0 %v579
        %650 = vmatpush1.bf16.msra.mxu0 %v578
        %651 = vmatprep.subr.bf16.mxu0 0
        %652 = vmatpush1.bf16.msra.mxu0 0
        %653 = vmatprep.subr.bf16.mxu0 0
        %654 = vmatpush1.bf16.msra.mxu0 0
        %655 = vmatprep.subr.bf16.mxu0 0
        %656 = vmatpush1.bf16.msra.mxu0 0
        %657 = vmatprep.subr.bf16.mxu0 0
        %658 = vmatpush1.bf16.msra.mxu0 0
        %659 = vmatprep.subr.bf16.mxu0 0
        %660 = vmatpush1.bf16.msra.mxu0 0
        %661 = vmatprep.subr.bf16.mxu0 0
        %662 = vmatpush1.bf16.msra.mxu0 0
        %663 = vmatprep.subr.bf16.mxu0 0
        %664 = vmatpush1.bf16.msra.mxu0 0
        %665 = vmatprep.subr.bf16.mxu0 0
        %666 = vmatpush1.bf16.msra.mxu0 0
        %667 = vmatprep.mubr.bf16.mxu0 0
        %668 = vmatmul.mubr.bf16.gmra.mrb[0].mxu0 %v420
        %v669 = vpop.f32.mrb[0].mxu0
        %v670 = vadd.f32 %v618, %v669
        %v671 = vpop.f32.mrb[0].mxu0
        %v672 = vadd.f32 %v622, %v671
        %v673 = vpop.f32.mrb[0].mxu0
        %v674 = vpop.f32.mrb[0].mxu0
        %675 = vdwg.mxu0
        %676 = vmatprep.subr.bf16.mxu0 %v553
        %677 = vmatpush1.bf16.msra.mxu0 %v552
        %678 = vmatprep.subr.bf16.mxu0 %v557
        %679 = vmatpush1.bf16.msra.mxu0 %v556
        %680 = vmatprep.subr.bf16.mxu0 %v561
        %681 = vmatpush1.bf16.msra.mxu0 %v560
        %682 = vmatprep.subr.bf16.mxu0 %v565
        %683 = vmatpush1.bf16.msra.mxu0 %v564
        %684 = vmatprep.subr.bf16.mxu0 %v569
        %685 = vmatpush1.bf16.msra.mxu0 %v568
        %686 = vmatprep.subr.bf16.mxu0 %v573
        %687 = vmatpush1.bf16.msra.mxu0 %v572
        %688 = vmatprep.subr.bf16.mxu0 %v577
        %689 = vmatpush1.bf16.msra.mxu0 %v576
        %690 = vmatprep.subr.bf16.mxu0 %v581
        %691 = vmatpush1.bf16.msra.mxu0 %v580
        %692 = vmatprep.subr.bf16.mxu0 0
        %693 = vmatpush1.bf16.msra.mxu0 0
        %694 = vmatprep.subr.bf16.mxu0 0
        %695 = vmatpush1.bf16.msra.mxu0 0
        %696 = vmatprep.subr.bf16.mxu0 0
        %697 = vmatpush1.bf16.msra.mxu0 0
        %698 = vmatprep.subr.bf16.mxu0 0
        %699 = vmatpush1.bf16.msra.mxu0 0
        %700 = vmatprep.subr.bf16.mxu0 0
        %701 = vmatpush1.bf16.msra.mxu0 0
        %702 = vmatprep.subr.bf16.mxu0 0
        %703 = vmatpush1.bf16.msra.mxu0 0
        %704 = vmatprep.subr.bf16.mxu0 0
        %705 = vmatpush1.bf16.msra.mxu0 0
        %706 = vmatprep.subr.bf16.mxu0 0
        %707 = vmatpush1.bf16.msra.mxu0 0
        %708 = vmatprep.mubr.bf16.mxu0 0
        %709 = vmatmul.mubr.bf16.gmra.mrb[0].mxu0 %v420
        %v710 = vpop.f32.mrb[0].mxu0
        %v711 = vadd.f32 %v626, %v710
        %v712 = vpop.f32.mrb[0].mxu0
        %v713 = vadd.f32 %v630, %v712
        %v714 = vpop.f32.mrb[0].mxu0
        %v715 = vpop.f32.mrb[0].mxu0
        %716 = vdwg.mxu0
        %v717 = vmul.f32 %v670, %v670
        %v718 = vmul.f32 %v672, %v672
        %v719 = vmul.f32 %v711, %v711
        %v720 = vmul.f32 %v713, %v713
        %vm721 = vcmask 1040384
        %v722 = vsel %vm721, %v717, 0.0
        %v723 = vsel %vm721, %v718, 0.0
        %v724 = vadd.f32 %v722, %v723
        %v725 = vsel %vm721, %v719, 0.0
        %v726 = vadd.f32 %v724, %v725
        %v727 = vsel %vm721, %v720, 0.0
        %v728 = vadd.f32 %v726, %v727
        %729 = vadd.xlane.f32.xlu0 %v728
        %v730 = vpop.xlane.xlu0 %729
        %v731 = vmax.f32 %v730, 1e-24
        %v732 = vrsqrt.pop %v731
        %v733 = vmul.f32 %v670, %v732
        %v734 = vmul.f32 %v672, %v732
        %v735 = vmul.f32 %v711, %v732
        %v736 = vmul.f32 %v713, %v732
        %v741 = vcombine.low %v733, %v734
        %v742 = vcombine.low %v735, %v736
        %v744 = vunpack.c.l.s4 1966171168
        %v745 = vunpack.c.0.s8 %v744
        %v746 = vlaneseq
        %v747 = vshrl.u32 %v746, 7
        %v748 = vsub.s32 %v745, %v747
        %v749 = vrot.slane %v741, %v748
        %v751 = vunpack.c.l.s4 1966171168
        %v752 = vunpack.c.0.s8 %v751
        %v753 = vlaneseq
        %v754 = vshrl.u32 %v753, 7
        %v755 = vsub.s32 %v752, %v754
        %v756 = vrot.slane %v742, %v755
        %v757 = vcombine.low %v749, %v756
        %v759 = vunpack.c.l.s4 1966171168
        %v760 = vunpack.c.0.s8 %v759
        %v761 = vlaneseq
        %v762 = vshrl.u32 %v761, 7
        %v763 = vsub.s32 %v760, %v762
        %v764 = vrot.slane %v757, %v763
        %v766 = vlaneseq
        %vm767 = vcmp.ge.s32.totalorder %v766, 0
        %vm768 = vcmp.lt.s32.totalorder %v766, 512
        %vm769 = vmand %vm767, %vm768
        %770 = vst.msk [vmem:[%s223] sm:$0xf] %vm769, %v764
      $region44: #{identification_base_forward.1} parent=35 // pred_fallthru
        _
      %p771 = scmp.lt.s32.totalorder %s19, 1
      %s772 = scalar_select %p771, %s19, 1
      %s773 = smul.addr %s772, 4
      %s774 = scalar_lea.vmem %s4, %s773
      // Predicated region
      $region45: #{identification_base_forward.1} parent=35 // pred_check
        %p775 = pneg %p136
      $region46: #{identification_base_forward.1} parent=35 // pred_check_branch
        %777 = sbr.rel (%p775) target = $region48
      $region47: #{identification_base_forward.1} parent=35 // pred_region
        _
      $region48: #{identification_base_forward.1} parent=35 // pred_fallthru
        _
    $region36: #{identification_base_forward.1} parent=5 // pred_fallthru
      _
    %p778 = scmp.le.s32.totalorder 2, %s10
    // Predicated region
    $region49: #{identification_base_forward.1} parent=5 // pred_check
      %p779 = pneg %p778
    $region50: #{identification_base_forward.1} parent=5 // pred_check_branch
      %781 = sbr.rel (%p779) target = $region52
    $region51: #{identification_base_forward.1} parent=5 // pred_region
      %s782 = ssub.s32 %s10, 2
      // Predicated region
      $region53: #{identification_base_forward.1} parent=51 // pred_check
        %p783 = pneg %p142
      $region54: #{identification_base_forward.1} parent=51 // pred_check_branch
        %785 = sbr.rel (%p783) target = $region56
      $region55: #{identification_base_forward.1} parent=51 // pred_region
        %p786 = scmp.lt.s32.totalorder %s21, 1
        %s787 = scalar_select %p786, %s21, 1
        %s788 = smul.addr %s787, 4
        %s789 = scalar_lea.vmem %s4, %s788
      $region56: #{identification_base_forward.1} parent=51 // pred_fallthru
        _
    $region52: #{identification_base_forward.1} parent=5 // pred_fallthru
      _
  $region6: #{identification_base_forward.1} parent=0 // loop_footer
    %s14 = sadd.s32 1, %s10
  $region7: #{identification_base_forward.1} parent=0 // loop_footer_branch
    %9 = sbr.rel target = $region3
  $region8: #{identification_base_forward.1} parent=0 // loop_exit
    _

</llo_original>
